<compile_context>
chip_gen: v7x
topology: tpu7x:2x2x1
jax: 0.10.0
libtpu: 0.0.40
codegen_flags: <defaults>
</compile_context>

<pallas_src>
import jax
import jax.numpy as jnp
from jax.experimental import pallas as pl
from jax.experimental.pallas import tpu as pltpu

LANE = 128


def _round_up(x, m):
    return ((x + m - 1) // m) * m


def _encoder_kernel(x_ref, w1_ref, b1_ref, w2_ref, b2_ref, o_ref):
    """Fused forward for one row tile.

    x_ref : (tile_m, Kp)        bf16
    w1_ref: (Kp, 3*Kp)          bf16   fused adapter first layers
    b1_ref: (1, 3*Kp)           f32
    w2_ref: (4*Kp, Np)          bf16   [Wp ; W2t ; W2s ; W2q]
    b2_ref: (1, Np)             f32    bp + b2t + b2s + b2q (pre-summed)
    o_ref : (tile_m, Np)
    """
    x = x_ref[...]                                            # bf16 operand

    # All three adapter hidden layers in one MXU push: (tile_m, 3*Kp), f32 acc.
    h = jnp.dot(x, w1_ref[...], preferred_element_type=jnp.float32)
    h = jnp.maximum(h + b1_ref[...], 0.0)                     # bias + ReLU in f32
    # TODO(synk): dropout omitted (eval-mode identity); add PRNG masking for training.
    h = h.astype(x.dtype)                                     # back to bf16 for MXU

    # Single big dot computes base + tech + spatial + quantitative.
    xh = jnp.concatenate([x, h], axis=-1)                     # (tile_m, 4*Kp)
    acc = jnp.dot(xh, w2_ref[...], preferred_element_type=jnp.float32)

    # Epilogue (bias add + 0.25 scale) stays in f32, single final cast+store.
    o_ref[...] = ((acc + b2_ref[...]) * 0.25).astype(o_ref.dtype)


def pack_params(params, vision_dim, projection_dim, compute_dtype=jnp.bfloat16):
    """One-time host-side weight fusion + lane padding (to 128 multiples)."""
    kp = _round_up(vision_dim, LANE)
    np_ = _round_up(projection_dim, LANE)

    def pad_w(w, rows, cols):
        return jnp.pad(w, ((0, rows - w.shape[0]), (0, cols - w.shape[1])))

    def pad_b(b, cols):
        return jnp.pad(b, ((0, 0), (0, cols - b.shape[1])))

    w1 = jnp.concatenate(
        [pad_w(params["w1t"], kp, kp),
         pad_w(params["w1s"], kp, kp),
         pad_w(params["w1q"], kp, kp)], axis=1)               # (kp, 3*kp)
    b1 = jnp.concatenate(
        [pad_b(params["b1t"], kp),
         pad_b(params["b1s"], kp),
         pad_b(params["b1q"], kp)], axis=1)                   # (1, 3*kp)

    w2 = jnp.concatenate(
        [pad_w(params["wp"], kp, np_),
         pad_w(params["w2t"], kp, np_),
         pad_w(params["w2s"], kp, np_),
         pad_w(params["w2q"], kp, np_)], axis=0)              # (4*kp, np_)
    b2 = pad_b(params["bp"] + params["b2t"] + params["b2s"] + params["b2q"], np_)

    return {
        "w1": w1.astype(compute_dtype),
        "b1": b1.astype(jnp.float32),
        "w2": w2.astype(compute_dtype),
        "b2": b2.astype(jnp.float32),
        "d_in": vision_dim,
        "d_out": projection_dim,
        "d_in_pad": kp,
        "d_out_pad": np_,
    }


def engineering_vision_encoder(image_features, packed, *, tile_m=256,
                               compute_dtype=jnp.bfloat16, out_dtype=None):
    """image_features: (..., vision_dim) -> (..., projection_dim)."""
    if out_dtype is None:
        out_dtype = image_features.dtype
    lead = image_features.shape[:-1]
    d_in = image_features.shape[-1]
    assert d_in == packed["d_in"]
    kp, np_ = packed["d_in_pad"], packed["d_out_pad"]
    d_out = packed["d_out"]

    x = image_features.reshape(-1, d_in)
    m = x.shape[0]

    # Large sublane-aligned row tile (clamped for tiny inputs); pad rows to it.
    tile_m = max(16, min(tile_m, _round_up(m, 16)))
    m_pad = _round_up(m, tile_m)
    x = jnp.pad(x, ((0, m_pad - m), (0, kp - d_in))).astype(compute_dtype)

    grid = (m_pad // tile_m,)

    def const2d(shape):
        # Weights/biases: constant block index -> resident in VMEM for all steps.
        return pl.BlockSpec(shape, lambda i: (0, 0))

    in_specs = [
        pl.BlockSpec((tile_m, kp), lambda i: (i, 0)),         # x row tile
        const2d((kp, 3 * kp)), const2d((1, 3 * kp)),          # fused adapter L1
        const2d((4 * kp, np_)), const2d((1, np_)),            # fused proj + L2
    ]
    out_spec = pl.BlockSpec((tile_m, np_), lambda i: (i, 0))  # lane-dense output

    w_itemsize = jnp.dtype(compute_dtype).itemsize
    cost = pl.CostEstimate(
        flops=2 * m_pad * kp * (3 * kp) + 2 * m_pad * (4 * kp) * np_,
        transcendentals=0,
        bytes_accessed=(m_pad * kp + kp * 3 * kp + 4 * kp * np_) * w_itemsize
                       + (3 * kp + np_) * 4
                       + m_pad * np_ * jnp.dtype(out_dtype).itemsize,
    )

    fn = pl.pallas_call(
        _encoder_kernel,
        out_shape=jax.ShapeDtypeStruct((m_pad, np_), out_dtype),
        grid_spec=pltpu.PrefetchScalarGridSpec(
            num_scalar_prefetch=0,
            grid=grid,
            in_specs=in_specs,
            out_specs=out_spec,
        ),
        compiler_params=pltpu.CompilerParams(
            dimension_semantics=("parallel",),       # row tiles shard across TCs
            vmem_limit_bytes=64 * 1024 * 1024,       # explicit VMEM budget
        ),
        cost_estimate=cost,
    )

    out = fn(x, packed["w1"], packed["b1"], packed["w2"], packed["b2"])
    out = out[:m, :d_out]                             # strip row / lane padding
    return out.reshape(*lead, d_out)


def init_params(key, vision_dim, projection_dim, dtype=jnp.float32):
    """Deterministic synthetic parameter init (shapes match the torch module)."""
    keys = jax.random.split(key, 14)
    s_in = 1.0 / jnp.sqrt(vision_dim).astype(dtype)

    def lin(kw, kb, d_in, d_out):
        # stored as (in, out) == torch W.T
        w = jax.random.uniform(kw, (d_in, d_out), dtype, -s_in, s_in)
        b = jax.random.uniform(kb, (1, d_out), dtype, -s_in, s_in)
        return w, b

    wp, bp = lin(keys[0], keys[1], vision_dim, projection_dim)
    w1t, b1t = lin(keys[2], keys[3], vision_dim, vision_dim)
    w2t, b2t = lin(keys[4], keys[5], vision_dim, projection_dim)
    w1s, b1s = lin(keys[6], keys[7], vision_dim, vision_dim)
    w2s, b2s = lin(keys[8], keys[9], vision_dim, projection_dim)
    w1q, b1q = lin(keys[10], keys[11], vision_dim, vision_dim)
    w2q, b2q = lin(keys[12], keys[13], vision_dim, projection_dim)
    return dict(
        wp=wp, bp=bp,
        w1t=w1t, b1t=b1t, w2t=w2t, b2t=b2t,
        w1s=w1s, b1s=b1s, w2s=w2s, b2s=b2s,
        w1q=w1q, b1q=b1q, w2q=w2q, b2q=b2q,
    )


def reference(x_flat, p):
    """Pure-JAX f32 reference of the torch forward (parallel mode, eval)."""
    def adapter(w1, b1, w2, b2):
        h = jnp.maximum(x_flat @ w1 + b1, 0.0)
        return h @ w2 + b2

    base = x_flat @ p["wp"] + p["bp"]
    t = adapter(p["w1t"], p["b1t"], p["w2t"], p["b2t"])
    s = adapter(p["w1s"], p["b1s"], p["w2s"], p["b2s"])
    q = adapter(p["w1q"], p["b1q"], p["w2q"], p["b2q"])
    return (base + t + s + q) / 4.0


if __name__ == "__main__":
    batch, seq = 2, 8
    vision_dim, projection_dim = 32, 64

    key = jax.random.PRNGKey(0)
    k_x, k_p = jax.random.split(key)

    image_features = jax.random.normal(k_x, (batch, seq, vision_dim), jnp.float32)
    params = init_params(k_p, vision_dim, projection_dim)
    packed = pack_params(params, vision_dim, projection_dim,
                         compute_dtype=jnp.bfloat16)

    out = engineering_vision_encoder(image_features, packed, tile_m=256)
    out = jax.block_until_ready(out)

    x_flat = image_features.reshape(batch * seq, vision_dim)
    ref = reference(x_flat, params).reshape(batch, seq, projection_dim)

    assert out.shape == (batch, seq, projection_dim)
    # bf16 MXU operands with f32 accumulation -> loosened tolerance vs f32 reference.
    assert jnp.allclose(out, ref, atol=3e-2, rtol=3e-2), "mismatch vs reference"

    print("KERNEL_OK")
</pallas_src>

<mosaic_0001>
module attributes {stable_mosaic.version = 11 : i64} {
  func.func @_encoder_kernel(%arg0: i32, %arg1: memref<16x128xbf16, #tpu.memory_space<vmem>>, %arg2: memref<128x384xbf16, #tpu.memory_space<vmem>>, %arg3: memref<1x384xf32, #tpu.memory_space<vmem>>, %arg4: memref<512x128xbf16, #tpu.memory_space<vmem>>, %arg5: memref<1x128xf32, #tpu.memory_space<vmem>>, %arg6: memref<16x128xf32, #tpu.memory_space<vmem>>) attributes {dimension_semantics = [#tpu.dimension_semantics<parallel>], iteration_bounds = array<i64: 1>, scalar_prefetch = 0 : i64, scratch_operands = 0 : i64, tpu.core_type = #tpu.core_type<tc>, window_params = [{transform_indices = @transform_0, window_bounds = array<i64: 16, 128>}, {pipeline_mode = #tpu.pipeline_mode<synchronous>, transform_indices = @transform_1, window_bounds = array<i64: 128, 384>}, {pipeline_mode = #tpu.pipeline_mode<synchronous>, transform_indices = @transform_2, window_bounds = array<i64: 1, 384>}, {pipeline_mode = #tpu.pipeline_mode<synchronous>, transform_indices = @transform_3, window_bounds = array<i64: 512, 128>}, {pipeline_mode = #tpu.pipeline_mode<synchronous>, transform_indices = @transform_4, window_bounds = array<i64: 1, 128>}, {transform_indices = @transform_5, window_bounds = array<i64: 16, 128>}]} {
    %c0 = arith.constant 0 : index
    %c0_0 = arith.constant 0 : index
    %0 = vector.load %arg1[%c0, %c0_0] : memref<16x128xbf16, #tpu.memory_space<vmem>>, vector<16x128xbf16>
    %c0_1 = arith.constant 0 : index
    %c0_2 = arith.constant 0 : index
    %1 = vector.load %arg2[%c0_1, %c0_2] : memref<128x384xbf16, #tpu.memory_space<vmem>>, vector<128x384xbf16>
    %cst = arith.constant dense<0.000000e+00> : vector<16x384xf32>
    %2 = tpu.matmul %0, %1, %cst {dimension_numbers = #tpu.dot_dimension_numbers<[1], [0], [0], [1], [0, 0, 1, 1], [], []>} : vector<16x128xbf16>, vector<128x384xbf16>, vector<16x384xf32> -> vector<16x384xf32>
    %c0_3 = arith.constant 0 : index
    %c0_4 = arith.constant 0 : index
    %3 = vector.load %arg3[%c0_3, %c0_4] : memref<1x384xf32, #tpu.memory_space<vmem>>, vector<1x384xf32>
    %4 = vector.broadcast %3 : vector<1x384xf32> to vector<16x384xf32>
    %5 = arith.addf %2, %4 : vector<16x384xf32>
    %cst_5 = arith.constant 0.000000e+00 : f32
    %6 = vector.broadcast %cst_5 : f32 to vector<16x384xf32>
    %7 = arith.maximumf %5, %6 : vector<16x384xf32>
    %8 = arith.truncf %7 : vector<16x384xf32> to vector<16x384xbf16>
    %9 = tpu.concatenate %0, %8 in 1 : vector<16x128xbf16>, vector<16x384xbf16> -> vector<16x512xbf16>
    %c0_6 = arith.constant 0 : index
    %c0_7 = arith.constant 0 : index
    %10 = vector.load %arg4[%c0_6, %c0_7] : memref<512x128xbf16, #tpu.memory_space<vmem>>, vector<512x128xbf16>
    %cst_8 = arith.constant dense<0.000000e+00> : vector<16x128xf32>
    %11 = tpu.matmul %9, %10, %cst_8 {dimension_numbers = #tpu.dot_dimension_numbers<[1], [0], [0], [1], [0, 0, 1, 1], [], []>} : vector<16x512xbf16>, vector<512x128xbf16>, vector<16x128xf32> -> vector<16x128xf32>
    %c0_9 = arith.constant 0 : index
    %c0_10 = arith.constant 0 : index
    %12 = vector.load %arg5[%c0_9, %c0_10] : memref<1x128xf32, #tpu.memory_space<vmem>>, vector<1x128xf32>
    %13 = vector.broadcast %12 : vector<1x128xf32> to vector<16x128xf32>
    %14 = arith.addf %11, %13 : vector<16x128xf32>
    %cst_11 = arith.constant 2.500000e-01 : f32
    %15 = vector.broadcast %cst_11 : f32 to vector<16x128xf32>
    %16 = arith.mulf %14, %15 : vector<16x128xf32>
    %c0_12 = arith.constant 0 : index
    %c0_13 = arith.constant 0 : index
    %17 = vector.load %arg6[%c0_12, %c0_13] : memref<16x128xf32, #tpu.memory_space<vmem>>, vector<16x128xf32>
    tpu.vector_store %arg6[%c0_12, %c0_13], %16 {strides = array<i32>} : memref<16x128xf32, #tpu.memory_space<vmem>>, vector<16x128xf32>,
    return
  }
  func.func @transform_0(%arg0: i32) -> (i32, i32) {
    %c0_i32 = arith.constant 0 : i32
    %c0_i32_0 = arith.constant 0 : i32
    return %arg0, %c0_i32 : i32, i32
  }
  func.func @transform_1(%arg0: i32) -> (i32, i32) {
    %c0_i32 = arith.constant 0 : i32
    %c0_i32_0 = arith.constant 0 : i32
    %c0_i32_1 = arith.constant 0 : i32
    return %c0_i32, %c0_i32_0 : i32, i32
  }
  func.func @transform_2(%arg0: i32) -> (i32, i32) {
    %c0_i32 = arith.constant 0 : i32
    %c0_i32_0 = arith.constant 0 : i32
    %c0_i32_1 = arith.constant 0 : i32
    return %c0_i32, %c0_i32_0 : i32, i32
  }
  func.func @transform_3(%arg0: i32) -> (i32, i32) {
    %c0_i32 = arith.constant 0 : i32
    %c0_i32_0 = arith.constant 0 : i32
    %c0_i32_1 = arith.constant 0 : i32
    return %c0_i32, %c0_i32_0 : i32, i32
  }
  func.func @transform_4(%arg0: i32) -> (i32, i32) {
    %c0_i32 = arith.constant 0 : i32
    %c0_i32_0 = arith.constant 0 : i32
    %c0_i32_1 = arith.constant 0 : i32
    return %c0_i32, %c0_i32_0 : i32, i32
  }
  func.func @transform_5(%arg0: i32) -> (i32, i32) {
    %c0_i32 = arith.constant 0 : i32
    %c0_i32_0 = arith.constant 0 : i32
    return %arg0, %c0_i32 : i32, i32
  }
}

</mosaic_0001>

<llo_original>
// kernel: tpu_custom_call.1
$region0: #{tpu_custom_call.1}
  #allocation0 [shape = 'u32[]', space=smem, size = 0x4, offset = 0x4, fixed_abs, tag = 'smem constant byte address 0x4 - core index']
  #allocation1 [shape = 'u32[144,128]{1,0:T(1,128)}', space=vmem, size = 0x12000, scoped, tag = 'internal scratch']
  %s0 = inlined_call_operand.hbm [shape: bf16[16,128], index: 0, kind: input, shape index: {}]
  %s1 = inlined_call_operand.hbm [shape: bf16[128,384], index: 1, kind: input, shape index: {}]
  %s2 = inlined_call_operand.hbm [shape: f32[1,384], index: 2, kind: input, shape index: {}]
  %s3 = inlined_call_operand.hbm [shape: bf16[512,128], index: 3, kind: input, shape index: {}]
  %s4 = inlined_call_operand.hbm [shape: f32[1,128], index: 4, kind: input, shape index: {}]
  %s5 = inlined_call_operand.hbm [shape: f32[16,128], index: 5, kind: output, shape index: {}]
  %s6 = sld [smem:[#allocation0]]
  $region50: #{tpu_custom_call.1} parent=0
    _
  %s8 = ssub.s32 1, %s6
  %s9 = scalar_select 0, %s8, %s6
  $region1: #{tpu_custom_call.1} parent=0
    #allocation2 [shape = 'u8[4096]{0}', space=vmem, size = 0x1000, scoped, tag = 'input window, operand 0, single buffered']
    #allocation3 [shape = 's32[1]{0}', space=sflag, size = 0x4, scoped, tag = 'scoped memory for tpu_custom_call.1']
    #allocation4 [shape = 's32[1]{0}', space=sflag, size = 0x4, scoped, tag = 'scoped memory for tpu_custom_call.1']
    #allocation5 [shape = 'u8[98304]{0}', space=vmem, size = 0x18000, scoped, tag = 'input window, operand 1, single buffered']
    #allocation6 [shape = 's32[1]{0}', space=sflag, size = 0x4, scoped, tag = 'scoped memory for tpu_custom_call.1']
    #allocation7 [shape = 'u8[1536]{0}', space=vmem, size = 0x800, scoped, tag = 'input window, operand 2, single buffered']
    #allocation8 [shape = 'u8[131072]{0}', space=vmem, size = 0x20000, scoped, tag = 'input window, operand 3, single buffered']
    #allocation9 [shape = 's32[1]{0}', space=sflag, size = 0x4, scoped, tag = 'scoped memory for tpu_custom_call.1']
    #allocation10 [shape = 'u8[512]{0}', space=vmem, size = 0x400, scoped, tag = 'input window, operand 4, single buffered']
    #allocation11 [shape = 'u8[8192]{0}', space=vmem, size = 0x2000, scoped, tag = 'output window, operand 0, single buffered']
    %10 = vsyncpa [#allocation3], 0
    %11 = vsyncpa [#allocation6], 0
    %12 = vsyncpa [#allocation9], 0
    %13 = vsyncpa [#allocation4], 0
    // Predicated region
    $region2: #{tpu_custom_call.1} parent=1 // pred_check
      _
    $region3: #{tpu_custom_call.1} parent=1 // pred_check_branch
      %15 = sbr.rel (0) target = $region5
    $region4: #{tpu_custom_call.1} parent=1 // pred_region
      %s17 = ssub.s32 128, 128
      %18 = vsyncadd [#allocation3], %s17
      %s19 = sshll.u32 [#allocation2], 4
      %s20 = int_to_ptr.vmem [resolvable:$true] %s19
      %25 = dma.hbm_to_vmem [thread:$0]  %s0, 128, %s20, [#allocation3], 64, 64, 4
    $region5: #{tpu_custom_call.1} parent=1 // pred_fallthru
      _
    // Predicated region
    $region6: #{tpu_custom_call.1} parent=1 // pred_check
      _
    $region7: #{tpu_custom_call.1} parent=1 // pred_check_branch
      %27 = sbr.rel (0) target = $region9
    $region8: #{tpu_custom_call.1} parent=1 // pred_region
      %s29 = ssub.s32 3072, 3072
      %30 = vsyncadd [#allocation6], %s29
      %s31 = sshll.u32 [#allocation5], 4
      %s32 = int_to_ptr.vmem [resolvable:$true] %s31
      %37 = dma.hbm_to_vmem [thread:$0]  %s1, 3072, %s32, [#allocation6], 192, 192, 12
    $region9: #{tpu_custom_call.1} parent=1 // pred_fallthru
      _
    // Predicated region
    $region10: #{tpu_custom_call.1} parent=1 // pred_check
      _
    $region11: #{tpu_custom_call.1} parent=1 // pred_check_branch
      %39 = sbr.rel (0) target = $region13
    $region12: #{tpu_custom_call.1} parent=1 // pred_region
      %s41 = ssub.s32 48, 48
      %42 = vsyncadd [#allocation6], %s41
      %s44 = sshll.u32 [#allocation7], 4
      %s45 = int_to_ptr.vmem [resolvable:$true] %s44
      %47 = dma.hbm_to_vmem [thread:$0]  %s2, 48, %s45, [#allocation6]
    $region13: #{tpu_custom_call.1} parent=1 // pred_fallthru
      _
    // Predicated region
    $region14: #{tpu_custom_call.1} parent=1 // pred_check
      _
    $region15: #{tpu_custom_call.1} parent=1 // pred_check_branch
      %49 = sbr.rel (0) target = $region17
    $region16: #{tpu_custom_call.1} parent=1 // pred_region
      %s51 = ssub.s32 4096, 4096
      %52 = vsyncadd [#allocation9], %s51
      %s53 = sshll.u32 [#allocation8], 4
      %s54 = int_to_ptr.vmem [resolvable:$true] %s53
      %59 = dma.hbm_to_vmem [thread:$0]  %s3, 4096, %s54, [#allocation9], 64, 64, 4
    $region17: #{tpu_custom_call.1} parent=1 // pred_fallthru
      _
    // Predicated region
    $region18: #{tpu_custom_call.1} parent=1 // pred_check
      _
    $region19: #{tpu_custom_call.1} parent=1 // pred_check_branch
      %61 = sbr.rel (0) target = $region21
    $region20: #{tpu_custom_call.1} parent=1 // pred_region
      %s63 = ssub.s32 16, 16
      %64 = vsyncadd [#allocation9], %s63
      %s66 = sshll.u32 [#allocation10], 4
      %s67 = int_to_ptr.vmem [resolvable:$true] %s66
      %69 = dma.hbm_to_vmem [thread:$0]  %s4, 16, %s67, [#allocation9]
    $region21: #{tpu_custom_call.1} parent=1 // pred_fallthru
      _
    // Predicated region
    $region22: #{tpu_custom_call.1} parent=1 // pred_check
      _
    $region23: #{tpu_custom_call.1} parent=1 // pred_check_branch
      %71 = sbr.rel (0) target = $region25
    $region24: #{tpu_custom_call.1} parent=1 // pred_region
      %72 = dma.done [#allocation3], 128
    $region25: #{tpu_custom_call.1} parent=1 // pred_fallthru
      _
    // Predicated region
    $region26: #{tpu_custom_call.1} parent=1 // pred_check
      _
    $region27: #{tpu_custom_call.1} parent=1 // pred_check_branch
      %74 = sbr.rel (0) target = $region29
    $region28: #{tpu_custom_call.1} parent=1 // pred_region
      %75 = dma.done [#allocation6], 3072
    $region29: #{tpu_custom_call.1} parent=1 // pred_fallthru
      _
    // Predicated region
    $region30: #{tpu_custom_call.1} parent=1 // pred_check
      _
    $region31: #{tpu_custom_call.1} parent=1 // pred_check_branch
      %77 = sbr.rel (0) target = $region33
    $region32: #{tpu_custom_call.1} parent=1 // pred_region
      %78 = dma.done [#allocation6], 48
    $region33: #{tpu_custom_call.1} parent=1 // pred_fallthru
      _
    // Predicated region
    $region34: #{tpu_custom_call.1} parent=1 // pred_check
      _
    $region35: #{tpu_custom_call.1} parent=1 // pred_check_branch
      %80 = sbr.rel (0) target = $region37
    $region36: #{tpu_custom_call.1} parent=1 // pred_region
      %81 = dma.done [#allocation9], 4096
    $region37: #{tpu_custom_call.1} parent=1 // pred_fallthru
      _
    // Predicated region
    $region38: #{tpu_custom_call.1} parent=1 // pred_check
      _
    $region39: #{tpu_custom_call.1} parent=1 // pred_check_branch
      %83 = sbr.rel (0) target = $region41
    $region40: #{tpu_custom_call.1} parent=1 // pred_region
      %84 = dma.done [#allocation9], 16
    $region41: #{tpu_custom_call.1} parent=1 // pred_fallthru
      _
    %v86 = vld [vmem:[#allocation2] sm:$0xf]
    %v87 = vld [vmem:[#allocation2 + $0x4] sm:$0xf]
    %v88 = vld [vmem:[#allocation5] sm:$0xff]
    %v89 = vld [vmem:[#allocation5 + $0x8] sm:$0xf]
    %v90 = vld [vmem:[#allocation5 + $0xc] sm:$0xff]
    %v91 = vld [vmem:[#allocation5 + $0x14] sm:$0xf]
    %v92 = vld [vmem:[#allocation5 + $0x18] sm:$0xff]
    %v93 = vld [vmem:[#allocation5 + $0x20] sm:$0xf]
    %v94 = vld [vmem:[#allocation5 + $0x24] sm:$0xff]
    %v95 = vld [vmem:[#allocation5 + $0x2c] sm:$0xf]
    %v96 = vld [vmem:[#allocation5 + $0x30] sm:$0xff]
    %v97 = vld [vmem:[#allocation5 + $0x38] sm:$0xf]
    %v98 = vld [vmem:[#allocation5 + $0x3c] sm:$0xff]
    %v99 = vld [vmem:[#allocation5 + $0x44] sm:$0xf]
    %v100 = vld [vmem:[#allocation5 + $0x48] sm:$0xff]
    %v101 = vld [vmem:[#allocation5 + $0x50] sm:$0xf]
    %v102 = vld [vmem:[#allocation5 + $0x54] sm:$0xff]
    %v103 = vld [vmem:[#allocation5 + $0x5c] sm:$0xf]
    %v104 = vld [vmem:[#allocation5 + $0x60] sm:$0xff]
    %v105 = vld [vmem:[#allocation5 + $0x68] sm:$0xf]
    %v106 = vld [vmem:[#allocation5 + $0x6c] sm:$0xff]
    %v107 = vld [vmem:[#allocation5 + $0x74] sm:$0xf]
    %v108 = vld [vmem:[#allocation5 + $0x78] sm:$0xff]
    %v109 = vld [vmem:[#allocation5 + $0x80] sm:$0xf]
    %v110 = vld [vmem:[#allocation5 + $0x84] sm:$0xff]
    %v111 = vld [vmem:[#allocation5 + $0x8c] sm:$0xf]
    %v112 = vld [vmem:[#allocation5 + $0x90] sm:$0xff]
    %v113 = vld [vmem:[#allocation5 + $0x98] sm:$0xf]
    %v114 = vld [vmem:[#allocation5 + $0x9c] sm:$0xff]
    %v115 = vld [vmem:[#allocation5 + $0xa4] sm:$0xf]
    %v116 = vld [vmem:[#allocation5 + $0xa8] sm:$0xff]
    %v117 = vld [vmem:[#allocation5 + $0xb0] sm:$0xf]
    %v118 = vld [vmem:[#allocation5 + $0xb4] sm:$0xff]
    %v119 = vld [vmem:[#allocation5 + $0xbc] sm:$0xf]
    %v120 = vld [vmem:[#allocation7] sm:$0x7]
    %v122 = vlaneseq
    %v123 = vshrl.u32 %v122, 7
    %v124 = vsub.s32 0, %v123
    %v125 = vrot.slane %v120, %v124
    %v126 = vlaneseq
    %v127 = vshrl.u32 %v126, 7
    %v128 = vsub.s32 1, %v127
    %v129 = vrot.slane %v120, %v128
    %v130 = vlaneseq
    %v131 = vshrl.u32 %v130, 7
    %v132 = vsub.s32 2, %v131
    %v133 = vrot.slane %v120, %v132
    %v139 = vunpack.c.l.b16 %v86
    %v140 = vunpack.c.l.b16 %v87
    %v141 = vpack.c.b16 %v140, %v139
    %v175 = vunpack.c.l.b16 %v88
    %v176 = vunpack.c.h.b16 %v88
    %v177 = vunpack.c.l.b16 %v89
    %v178 = vunpack.c.l.b16 %v90
    %v179 = vunpack.c.h.b16 %v90
    %v180 = vunpack.c.l.b16 %v91
    %v181 = vunpack.c.l.b16 %v92
    %v182 = vunpack.c.h.b16 %v92
    %v183 = vunpack.c.l.b16 %v93
    %v184 = vunpack.c.l.b16 %v94
    %v185 = vunpack.c.h.b16 %v94
    %v186 = vunpack.c.l.b16 %v95
    %v187 = vunpack.c.l.b16 %v96
    %v188 = vunpack.c.h.b16 %v96
    %v189 = vunpack.c.l.b16 %v97
    %v190 = vunpack.c.l.b16 %v98
    %v191 = vunpack.c.h.b16 %v98
    %v192 = vunpack.c.l.b16 %v99
    %v193 = vunpack.c.l.b16 %v100
    %v194 = vunpack.c.h.b16 %v100
    %v195 = vunpack.c.l.b16 %v101
    %v196 = vunpack.c.l.b16 %v102
    %v197 = vunpack.c.h.b16 %v102
    %v198 = vunpack.c.l.b16 %v103
    %v199 = vunpack.c.l.b16 %v104
    %v200 = vunpack.c.h.b16 %v104
    %v201 = vunpack.c.l.b16 %v105
    %v202 = vunpack.c.l.b16 %v106
    %v203 = vunpack.c.h.b16 %v106
    %v204 = vunpack.c.l.b16 %v107
    %v205 = vunpack.c.l.b16 %v108
    %v206 = vunpack.c.h.b16 %v108
    %v207 = vunpack.c.l.b16 %v109
    %v208 = vunpack.c.l.b16 %v110
    %v209 = vunpack.c.h.b16 %v110
    %v210 = vunpack.c.l.b16 %v111
    %v211 = vunpack.c.l.b16 %v112
    %v212 = vunpack.c.h.b16 %v112
    %v213 = vunpack.c.l.b16 %v113
    %v214 = vunpack.c.l.b16 %v114
    %v215 = vunpack.c.h.b16 %v114
    %v216 = vunpack.c.l.b16 %v115
    %v217 = vunpack.c.l.b16 %v116
    %v218 = vunpack.c.h.b16 %v116
    %v219 = vunpack.c.l.b16 %v117
    %v220 = vunpack.c.l.b16 %v118
    %v221 = vunpack.c.h.b16 %v118
    %v222 = vunpack.c.l.b16 %v119
    %v223 = vpack.c.b16 %v178, %v175
    %v224 = vpack.c.b16 %v179, %v176
    %v225 = vpack.c.b16 %v180, %v177
    %v226 = vpack.c.b16 %v184, %v181
    %v227 = vpack.c.b16 %v185, %v182
    %v228 = vpack.c.b16 %v186, %v183
    %v229 = vpack.c.b16 %v190, %v187
    %v230 = vpack.c.b16 %v191, %v188
    %v231 = vpack.c.b16 %v192, %v189
    %v232 = vpack.c.b16 %v196, %v193
    %v233 = vpack.c.b16 %v197, %v194
    %v234 = vpack.c.b16 %v198, %v195
    %v235 = vpack.c.b16 %v202, %v199
    %v236 = vpack.c.b16 %v203, %v200
    %v237 = vpack.c.b16 %v204, %v201
    %v238 = vpack.c.b16 %v208, %v205
    %v239 = vpack.c.b16 %v209, %v206
    %v240 = vpack.c.b16 %v210, %v207
    %v241 = vpack.c.b16 %v214, %v211
    %v242 = vpack.c.b16 %v215, %v212
    %v243 = vpack.c.b16 %v216, %v213
    %v244 = vpack.c.b16 %v220, %v217
    %v245 = vpack.c.b16 %v221, %v218
    %v246 = vpack.c.b16 %v222, %v219
    %271 = vmatprep.subr.bf16.mxu0 %v224
    %272 = vmatpush1.bf16.msra.mxu0 %v223
    %273 = vmatprep.subr.bf16.mxu0 %v227
    %274 = vmatpush1.bf16.msra.mxu0 %v226
    %275 = vmatprep.subr.bf16.mxu0 %v230
    %276 = vmatpush1.bf16.msra.mxu0 %v229
    %277 = vmatprep.subr.bf16.mxu0 %v233
    %278 = vmatpush1.bf16.msra.mxu0 %v232
    %279 = vmatprep.subr.bf16.mxu0 %v236
    %280 = vmatpush1.bf16.msra.mxu0 %v235
    %281 = vmatprep.subr.bf16.mxu0 %v239
    %282 = vmatpush1.bf16.msra.mxu0 %v238
    %283 = vmatprep.subr.bf16.mxu0 %v242
    %284 = vmatpush1.bf16.msra.mxu0 %v241
    %285 = vmatprep.subr.bf16.mxu0 %v245
    %286 = vmatpush1.bf16.msra.mxu0 %v244
    %287 = vmatprep.subr.bf16.mxu0 0
    %288 = vmatpush1.bf16.msra.mxu0 0
    %289 = vmatprep.subr.bf16.mxu0 0
    %290 = vmatpush1.bf16.msra.mxu0 0
    %291 = vmatprep.subr.bf16.mxu0 0
    %292 = vmatpush1.bf16.msra.mxu0 0
    %293 = vmatprep.subr.bf16.mxu0 0
    %294 = vmatpush1.bf16.msra.mxu0 0
    %295 = vmatprep.subr.bf16.mxu0 0
    %296 = vmatpush1.bf16.msra.mxu0 0
    %297 = vmatprep.subr.bf16.mxu0 0
    %298 = vmatpush1.bf16.msra.mxu0 0
    %299 = vmatprep.subr.bf16.mxu0 0
    %300 = vmatpush1.bf16.msra.mxu0 0
    %301 = vmatprep.subr.bf16.mxu0 0
    %302 = vmatpush1.bf16.msra.mxu0 0
    %303 = vmatprep.mubr.bf16.mxu0 0
    %304 = vmatmul.mubr.bf16.gmra.mrb[0].mxu0 %v141
    %v305 = vpop.f32.mrb[0].mxu0
    %v306 = vadd.f32 %v125, %v305
    %v307 = vpop.f32.mrb[0].mxu0
    %v308 = vadd.f32 %v129, %v307
    %v309 = vpop.f32.mrb[0].mxu0
    %v310 = vadd.f32 %v125, %v309
    %v311 = vpop.f32.mrb[0].mxu0
    %v312 = vadd.f32 %v129, %v311
    %313 = vdwg.mxu0
    %314 = vmatprep.subr.bf16.mxu0 0
    %315 = vmatpush1.bf16.msra.mxu0 %v225
    %316 = vmatprep.subr.bf16.mxu0 0
    %317 = vmatpush1.bf16.msra.mxu0 %v228
    %318 = vmatprep.subr.bf16.mxu0 0
    %319 = vmatpush1.bf16.msra.mxu0 %v231
    %320 = vmatprep.subr.bf16.mxu0 0
    %321 = vmatpush1.bf16.msra.mxu0 %v234
    %322 = vmatprep.subr.bf16.mxu0 0
    %323 = vmatpush1.bf16.msra.mxu0 %v237
    %324 = vmatprep.subr.bf16.mxu0 0
    %325 = vmatpush1.bf16.msra.mxu0 %v240
    %326 = vmatprep.subr.bf16.mxu0 0
    %327 = vmatpush1.bf16.msra.mxu0 %v243
    %328 = vmatprep.subr.bf16.mxu0 0
    %329 = vmatpush1.bf16.msra.mxu0 %v246
    %330 = vmatprep.subr.bf16.mxu0 0
    %331 = vmatpush1.bf16.msra.mxu0 0
    %332 = vmatprep.subr.bf16.mxu0 0
    %333 = vmatpush1.bf16.msra.mxu0 0
    %334 = vmatprep.subr.bf16.mxu0 0
    %335 = vmatpush1.bf16.msra.mxu0 0
    %336 = vmatprep.subr.bf16.mxu0 0
    %337 = vmatpush1.bf16.msra.mxu0 0
    %338 = vmatprep.subr.bf16.mxu0 0
    %339 = vmatpush1.bf16.msra.mxu0 0
    %340 = vmatprep.subr.bf16.mxu0 0
    %341 = vmatpush1.bf16.msra.mxu0 0
    %342 = vmatprep.subr.bf16.mxu0 0
    %343 = vmatpush1.bf16.msra.mxu0 0
    %344 = vmatprep.subr.bf16.mxu0 0
    %345 = vmatpush1.bf16.msra.mxu0 0
    %346 = vmatprep.mubr.bf16.mxu0 0
    %347 = vmatmul.mubr.bf16.gmra.mrb[0].mxu0 %v141
    %v348 = vpop.f32.mrb[0].mxu0
    %v349 = vadd.f32 %v133, %v348
    %v350 = vpop.f32.mrb[0].mxu0
    %v351 = vpop.f32.mrb[0].mxu0
    %v352 = vadd.f32 %v133, %v351
    %v353 = vpop.f32.mrb[0].mxu0
    %354 = vdwg.mxu0
    %v355 = vmax.f32 %v306, 0.0
    %v356 = vmax.f32 %v308, 0.0
    %v357 = vmax.f32 %v349, 0.0
    %v358 = vmax.f32 %v310, 0.0
    %v359 = vmax.f32 %v312, 0.0
    %v360 = vmax.f32 %v352, 0.0
    %v361 = vpack.c.bf16 %v358, %v355
    %v362 = vpack.c.bf16 %v359, %v356
    %v363 = vpack.c.bf16 %v360, %v357
    %v364 = vld [vmem:[#allocation8] sm:$0xf]
    %v365 = vld [vmem:[#allocation8 + $0x4] sm:$0xf]
    %v366 = vld [vmem:[#allocation8 + $0x8] sm:$0xf]
    %v367 = vld [vmem:[#allocation8 + $0xc] sm:$0xf]
    %v368 = vld [vmem:[#allocation8 + $0x10] sm:$0xf]
    %v369 = vld [vmem:[#allocation8 + $0x14] sm:$0xf]
    %v370 = vld [vmem:[#allocation8 + $0x18] sm:$0xf]
    %v371 = vld [vmem:[#allocation8 + $0x1c] sm:$0xf]
    %v372 = vld [vmem:[#allocation8 + $0x20] sm:$0xf]
    %v373 = vld [vmem:[#allocation8 + $0x24] sm:$0xf]
    %v374 = vld [vmem:[#allocation8 + $0x28] sm:$0xf]
    %v375 = vld [vmem:[#allocation8 + $0x2c] sm:$0xf]
    %v376 = vld [vmem:[#allocation8 + $0x30] sm:$0xf]
    %v377 = vld [vmem:[#allocation8 + $0x34] sm:$0xf]
    %v378 = vld [vmem:[#allocation8 + $0x38] sm:$0xf]
    %v379 = vld [vmem:[#allocation8 + $0x3c] sm:$0xf]
    %v380 = vld [vmem:[#allocation8 + $0x40] sm:$0xf]
    %v381 = vld [vmem:[#allocation8 + $0x44] sm:$0xf]
    %v382 = vld [vmem:[#allocation8 + $0x48] sm:$0xf]
    %v383 = vld [vmem:[#allocation8 + $0x4c] sm:$0xf]
    %v384 = vld [vmem:[#allocation8 + $0x50] sm:$0xf]
    %v385 = vld [vmem:[#allocation8 + $0x54] sm:$0xf]
    %v386 = vld [vmem:[#allocation8 + $0x58] sm:$0xf]
    %v387 = vld [vmem:[#allocation8 + $0x5c] sm:$0xf]
    %v388 = vld [vmem:[#allocation8 + $0x60] sm:$0xf]
    %v389 = vld [vmem:[#allocation8 + $0x64] sm:$0xf]
    %v390 = vld [vmem:[#allocation8 + $0x68] sm:$0xf]
    %v391 = vld [vmem:[#allocation8 + $0x6c] sm:$0xf]
    %v392 = vld [vmem:[#allocation8 + $0x70] sm:$0xf]
    %v393 = vld [vmem:[#allocation8 + $0x74] sm:$0xf]
    %v394 = vld [vmem:[#allocation8 + $0x78] sm:$0xf]
    %v395 = vld [vmem:[#allocation8 + $0x7c] sm:$0xf]
    %v396 = vld [vmem:[#allocation8 + $0x80] sm:$0xf]
    %v397 = vld [vmem:[#allocation8 + $0x84] sm:$0xf]
    %v398 = vld [vmem:[#allocation8 + $0x88] sm:$0xf]
    %v399 = vld [vmem:[#allocation8 + $0x8c] sm:$0xf]
    %v400 = vld [vmem:[#allocation8 + $0x90] sm:$0xf]
    %v401 = vld [vmem:[#allocation8 + $0x94] sm:$0xf]
    %v402 = vld [vmem:[#allocation8 + $0x98] sm:$0xf]
    %v403 = vld [vmem:[#allocation8 + $0x9c] sm:$0xf]
    %v404 = vld [vmem:[#allocation8 + $0xa0] sm:$0xf]
    %v405 = vld [vmem:[#allocation8 + $0xa4] sm:$0xf]
    %v406 = vld [vmem:[#allocation8 + $0xa8] sm:$0xf]
    %v407 = vld [vmem:[#allocation8 + $0xac] sm:$0xf]
    %v408 = vld [vmem:[#allocation8 + $0xb0] sm:$0xf]
    %v409 = vld [vmem:[#allocation8 + $0xb4] sm:$0xf]
    %v410 = vld [vmem:[#allocation8 + $0xb8] sm:$0xf]
    %v411 = vld [vmem:[#allocation8 + $0xbc] sm:$0xf]
    %v412 = vld [vmem:[#allocation8 + $0xc0] sm:$0xf]
    %v413 = vld [vmem:[#allocation8 + $0xc4] sm:$0xf]
    %v414 = vld [vmem:[#allocation8 + $0xc8] sm:$0xf]
    %v415 = vld [vmem:[#allocation8 + $0xcc] sm:$0xf]
    %v416 = vld [vmem:[#allocation8 + $0xd0] sm:$0xf]
    %v417 = vld [vmem:[#allocation8 + $0xd4] sm:$0xf]
    %v418 = vld [vmem:[#allocation8 + $0xd8] sm:$0xf]
    %v419 = vld [vmem:[#allocation8 + $0xdc] sm:$0xf]
    %v420 = vld [vmem:[#allocation8 + $0xe0] sm:$0xf]
    %v421 = vld [vmem:[#allocation8 + $0xe4] sm:$0xf]
    %v422 = vld [vmem:[#allocation8 + $0xe8] sm:$0xf]
    %v423 = vld [vmem:[#allocation8 + $0xec] sm:$0xf]
    %v424 = vld [vmem:[#allocation8 + $0xf0] sm:$0xf]
    %v425 = vld [vmem:[#allocation8 + $0xf4] sm:$0xf]
    %v426 = vld [vmem:[#allocation8 + $0xf8] sm:$0xf]
    %v427 = vld [vmem:[#allocation8 + $0xfc] sm:$0xf]
    %v428 = vld [vmem:[#allocation10] sm:$0x1]
    %v430 = vlaneseq
    %v431 = vshrl.u32 %v430, 7
    %v432 = vsub.s32 0, %v431
    %v433 = vrot.slane %v428, %v432
    %v499 = vunpack.c.l.b16 %v364
    %v500 = vunpack.c.l.b16 %v365
    %v501 = vunpack.c.l.b16 %v366
    %v502 = vunpack.c.l.b16 %v367
    %v503 = vunpack.c.l.b16 %v368
    %v504 = vunpack.c.l.b16 %v369
    %v505 = vunpack.c.l.b16 %v370
    %v506 = vunpack.c.l.b16 %v371
    %v507 = vunpack.c.l.b16 %v372
    %v508 = vunpack.c.l.b16 %v373
    %v509 = vunpack.c.l.b16 %v374
    %v510 = vunpack.c.l.b16 %v375
    %v511 = vunpack.c.l.b16 %v376
    %v512 = vunpack.c.l.b16 %v377
    %v513 = vunpack.c.l.b16 %v378
    %v514 = vunpack.c.l.b16 %v379
    %v515 = vunpack.c.l.b16 %v380
    %v516 = vunpack.c.l.b16 %v381
    %v517 = vunpack.c.l.b16 %v382
    %v518 = vunpack.c.l.b16 %v383
    %v519 = vunpack.c.l.b16 %v384
    %v520 = vunpack.c.l.b16 %v385
    %v521 = vunpack.c.l.b16 %v386
    %v522 = vunpack.c.l.b16 %v387
    %v523 = vunpack.c.l.b16 %v388
    %v524 = vunpack.c.l.b16 %v389
    %v525 = vunpack.c.l.b16 %v390
    %v526 = vunpack.c.l.b16 %v391
    %v527 = vunpack.c.l.b16 %v392
    %v528 = vunpack.c.l.b16 %v393
    %v529 = vunpack.c.l.b16 %v394
    %v530 = vunpack.c.l.b16 %v395
    %v531 = vunpack.c.l.b16 %v396
    %v532 = vunpack.c.l.b16 %v397
    %v533 = vunpack.c.l.b16 %v398
    %v534 = vunpack.c.l.b16 %v399
    %v535 = vunpack.c.l.b16 %v400
    %v536 = vunpack.c.l.b16 %v401
    %v537 = vunpack.c.l.b16 %v402
    %v538 = vunpack.c.l.b16 %v403
    %v539 = vunpack.c.l.b16 %v404
    %v540 = vunpack.c.l.b16 %v405
    %v541 = vunpack.c.l.b16 %v406
    %v542 = vunpack.c.l.b16 %v407
    %v543 = vunpack.c.l.b16 %v408
    %v544 = vunpack.c.l.b16 %v409
    %v545 = vunpack.c.l.b16 %v410
    %v546 = vunpack.c.l.b16 %v411
    %v547 = vunpack.c.l.b16 %v412
    %v548 = vunpack.c.l.b16 %v413
    %v549 = vunpack.c.l.b16 %v414
    %v550 = vunpack.c.l.b16 %v415
    %v551 = vunpack.c.l.b16 %v416
    %v552 = vunpack.c.l.b16 %v417
    %v553 = vunpack.c.l.b16 %v418
    %v554 = vunpack.c.l.b16 %v419
    %v555 = vunpack.c.l.b16 %v420
    %v556 = vunpack.c.l.b16 %v421
    %v557 = vunpack.c.l.b16 %v422
    %v558 = vunpack.c.l.b16 %v423
    %v559 = vunpack.c.l.b16 %v424
    %v560 = vunpack.c.l.b16 %v425
    %v561 = vunpack.c.l.b16 %v426
    %v562 = vunpack.c.l.b16 %v427
    %v563 = vpack.c.b16 %v500, %v499
    %v564 = vpack.c.b16 %v502, %v501
    %v565 = vpack.c.b16 %v504, %v503
    %v566 = vpack.c.b16 %v506, %v505
    %v567 = vpack.c.b16 %v508, %v507
    %v568 = vpack.c.b16 %v510, %v509
    %v569 = vpack.c.b16 %v512, %v511
    %v570 = vpack.c.b16 %v514, %v513
    %v571 = vpack.c.b16 %v516, %v515
    %v572 = vpack.c.b16 %v518, %v517
    %v573 = vpack.c.b16 %v520, %v519
    %v574 = vpack.c.b16 %v522, %v521
    %v575 = vpack.c.b16 %v524, %v523
    %v576 = vpack.c.b16 %v526, %v525
    %v577 = vpack.c.b16 %v528, %v527
    %v578 = vpack.c.b16 %v530, %v529
    %v579 = vpack.c.b16 %v532, %v531
    %v580 = vpack.c.b16 %v534, %v533
    %v581 = vpack.c.b16 %v536, %v535
    %v582 = vpack.c.b16 %v538, %v537
    %v583 = vpack.c.b16 %v540, %v539
    %v584 = vpack.c.b16 %v542, %v541
    %v585 = vpack.c.b16 %v544, %v543
    %v586 = vpack.c.b16 %v546, %v545
    %v587 = vpack.c.b16 %v548, %v547
    %v588 = vpack.c.b16 %v550, %v549
    %v589 = vpack.c.b16 %v552, %v551
    %v590 = vpack.c.b16 %v554, %v553
    %v591 = vpack.c.b16 %v556, %v555
    %v592 = vpack.c.b16 %v558, %v557
    %v593 = vpack.c.b16 %v560, %v559
    %v594 = vpack.c.b16 %v562, %v561
    %627 = vmatprep.subr.bf16.mxu0 0
    %628 = vmatpush1.bf16.msra.mxu0 %v563
    %629 = vmatprep.subr.bf16.mxu0 0
    %630 = vmatpush1.bf16.msra.mxu0 %v564
    %631 = vmatprep.subr.bf16.mxu0 0
    %632 = vmatpush1.bf16.msra.mxu0 %v565
    %633 = vmatprep.subr.bf16.mxu0 0
    %634 = vmatpush1.bf16.msra.mxu0 %v566
    %635 = vmatprep.subr.bf16.mxu0 0
    %636 = vmatpush1.bf16.msra.mxu0 %v567
    %637 = vmatprep.subr.bf16.mxu0 0
    %638 = vmatpush1.bf16.msra.mxu0 %v568
    %639 = vmatprep.subr.bf16.mxu0 0
    %640 = vmatpush1.bf16.msra.mxu0 %v569
    %641 = vmatprep.subr.bf16.mxu0 0
    %642 = vmatpush1.bf16.msra.mxu0 %v570
    %643 = vmatprep.subr.bf16.mxu0 0
    %644 = vmatpush1.bf16.msra.mxu0 %v571
    %645 = vmatprep.subr.bf16.mxu0 0
    %646 = vmatpush1.bf16.msra.mxu0 %v572
    %647 = vmatprep.subr.bf16.mxu0 0
    %648 = vmatpush1.bf16.msra.mxu0 %v573
    %649 = vmatprep.subr.bf16.mxu0 0
    %650 = vmatpush1.bf16.msra.mxu0 %v574
    %651 = vmatprep.subr.bf16.mxu0 0
    %652 = vmatpush1.bf16.msra.mxu0 %v575
    %653 = vmatprep.subr.bf16.mxu0 0
    %654 = vmatpush1.bf16.msra.mxu0 %v576
    %655 = vmatprep.subr.bf16.mxu0 0
    %656 = vmatpush1.bf16.msra.mxu0 %v577
    %657 = vmatprep.subr.bf16.mxu0 0
    %658 = vmatpush1.bf16.msra.mxu0 %v578
    %659 = vmatprep.mubr.bf16.mxu0 %v361
    %660 = vmatmul.mubr.bf16.gmra.mrb[0].mxu0 %v141
    %v661 = vpop.f32.mrb[0].mxu0
    %v662 = vadd.f32 %v433, %v661
    %v663 = vpop.f32.mrb[0].mxu0
    %v664 = vpop.f32.mrb[0].mxu0
    %v665 = vadd.f32 %v433, %v664
    %v666 = vpop.f32.mrb[0].mxu0
    %667 = vdwg.mxu0
    %668 = vmatprep.subr.bf16.mxu0 0
    %669 = vmatpush1.bf16.msra.mxu0 %v579
    %670 = vmatprep.subr.bf16.mxu0 0
    %671 = vmatpush1.bf16.msra.mxu0 %v580
    %672 = vmatprep.subr.bf16.mxu0 0
    %673 = vmatpush1.bf16.msra.mxu0 %v581
    %674 = vmatprep.subr.bf16.mxu0 0
    %675 = vmatpush1.bf16.msra.mxu0 %v582
    %676 = vmatprep.subr.bf16.mxu0 0
    %677 = vmatpush1.bf16.msra.mxu0 %v583
    %678 = vmatprep.subr.bf16.mxu0 0
    %679 = vmatpush1.bf16.msra.mxu0 %v584
    %680 = vmatprep.subr.bf16.mxu0 0
    %681 = vmatpush1.bf16.msra.mxu0 %v585
    %682 = vmatprep.subr.bf16.mxu0 0
    %683 = vmatpush1.bf16.msra.mxu0 %v586
    %684 = vmatprep.subr.bf16.mxu0 0
    %685 = vmatpush1.bf16.msra.mxu0 %v587
    %686 = vmatprep.subr.bf16.mxu0 0
    %687 = vmatpush1.bf16.msra.mxu0 %v588
    %688 = vmatprep.subr.bf16.mxu0 0
    %689 = vmatpush1.bf16.msra.mxu0 %v589
    %690 = vmatprep.subr.bf16.mxu0 0
    %691 = vmatpush1.bf16.msra.mxu0 %v590
    %692 = vmatprep.subr.bf16.mxu0 0
    %693 = vmatpush1.bf16.msra.mxu0 %v591
    %694 = vmatprep.subr.bf16.mxu0 0
    %695 = vmatpush1.bf16.msra.mxu0 %v592
    %696 = vmatprep.subr.bf16.mxu0 0
    %697 = vmatpush1.bf16.msra.mxu0 %v593
    %698 = vmatprep.subr.bf16.mxu0 0
    %699 = vmatpush1.bf16.msra.mxu0 %v594
    %700 = vmatprep.mubr.bf16.mxu0 %v363
    %701 = vmatmul.mubr.bf16.gmra.mrb[0].mxu0 %v362
    %v702 = vpop.f32.mrb[0].mxu0
    %v703 = vadd.f32 %v662, %v702
    %v704 = vpop.f32.mrb[0].mxu0
    %v705 = vpop.f32.mrb[0].mxu0
    %v706 = vadd.f32 %v665, %v705
    %v707 = vpop.f32.mrb[0].mxu0
    %708 = vdwg.mxu0
    %v709 = vmul.f32 %v703, 0.25
    %v710 = vmul.f32 %v706, 0.25
    %711 = vst [vmem:[#allocation11] sm:$0xff] %v709
    %712 = vst [vmem:[#allocation11 + $0x8] sm:$0xff] %v710
    // Predicated region
    $region42: #{tpu_custom_call.1} parent=1 // pred_check
      _
    $region43: #{tpu_custom_call.1} parent=1 // pred_check_branch
      %714 = sbr.rel (0) target = $region45
    $region44: #{tpu_custom_call.1} parent=1 // pred_region
      %s716 = ssub.s32 256, 256
      %717 = vsyncadd [#allocation4], %s716
      %s718 = sshll.u32 [#allocation11], 4
      %s719 = int_to_ptr.vmem [resolvable:$true] %s718
      %724 = dma.vmem_to_hbm [thread:$0]  %s719, 256, %s5, [#allocation4], 128, 128, 8
    $region45: #{tpu_custom_call.1} parent=1 // pred_fallthru
      _
    // Predicated region
    $region46: #{tpu_custom_call.1} parent=1 // pred_check
      _
    $region47: #{tpu_custom_call.1} parent=1 // pred_check_branch
      %726 = sbr.rel (0) target = $region49
    $region48: #{tpu_custom_call.1} parent=1 // pred_region
      %727 = dma.done [#allocation4], 256
    $region49: #{tpu_custom_call.1} parent=1 // pred_fallthru
      _
    %728 = vsyncpa [#allocation3], 1
    %729 = vsyncpa [#allocation6], 1
    %730 = vsyncpa [#allocation9], 1
    %731 = vsyncpa [#allocation4], 1

</llo_original>
